<compile_context>
chip_gen: v7x
topology: tpu7x:2x2x1
jax: 0.10.0
libtpu: 0.0.40
codegen_flags: <defaults>
</compile_context>

<pallas_src>
import functools

import jax
import jax.numpy as jnp
from jax.experimental import pallas as pl
from jax.experimental.pallas import tpu as pltpu


LANE = 128
_VMEM_LIMIT = 48 * 1024 * 1024  # > 32 MiB default scoped limit, < v7x 64 MiB physical


def _round_up(n, m):
    return ((n + m - 1) // m) * m


def _pad_rows(x, n):
    return x if x.shape[0] == n else jnp.pad(x, ((0, n - x.shape[0]), (0, 0)))


def _pad_cols(x, n):
    return x if x.shape[1] == n else jnp.pad(x, ((0, 0), (0, n - x.shape[1])))


# ---------------------------------------------------------------------------
# Kernel 1: fused, tiled GCMC encoder for one destination node type.
#   grid = (Nd tiles ["parallel"], Ns tiles ["arbitrary", reduction last])
#   agg_ref (VMEM scratch, f32) accumulates the per-rating aggregation across Ns tiles;
#   finalize (ci scale, LeakyReLU, one fat fc matmul, bias) happens at the last Ns step.
# ---------------------------------------------------------------------------
def _encoder_kernel(x_ref, a_ref, cj_ref, ci_ref, wall_ref, wfc_ref, b_ref,
                    out_ref, agg_ref, *, R, M):
    s = pl.program_id(1)

    @pl.when(s == 0)
    def _init():
        agg_ref[...] = jnp.zeros_like(agg_ref)

    # h = (x * cj) @ [W_0 | ... | W_{R-1}]  -- one fat MXU call, bf16 operands, f32 accum.
    xs = (x_ref[...] * cj_ref[...]).astype(jnp.bfloat16)                    # [ts, Din]
    h = jnp.dot(xs, wall_ref[...], preferred_element_type=jnp.float32)      # [ts, R*M] f32
    h_bf = h.astype(jnp.bfloat16)

    # Per-rating adjacency contraction on A's lane axis (A is dest-major -> plain matmul,
    # no in-kernel transpose).  R is tiny -> static unroll.
    for r in range(R):
        agg_ref[r] = agg_ref[r] + jnp.dot(
            a_ref[r], h_bf[:, r * M:(r + 1) * M],
            preferred_element_type=jnp.float32)                             # [td, M]

    @pl.when(s == pl.num_programs(1) - 1)
    def _finalize():
        stacked = jnp.concatenate([agg_ref[r] for r in range(R)], axis=1)   # [td, R*M]
        stacked = stacked * ci_ref[...]                                     # ci: [td, 1]
        stacked = jnp.where(stacked >= 0, stacked, 0.1 * stacked)           # LeakyReLU(0.1)
        out = jnp.dot(stacked.astype(jnp.bfloat16), wfc_ref[...],
                      preferred_element_type=jnp.float32)                   # one K=R*M matmul
        out_ref[...] = out + b_ref[...]                                     # lane-dense store


def gcmc_encode(x, a, cj, ci, w_all, w_fc, b_fc, *, td=256, ts=512):
    """x: [Ns, Din] f32, a: [R, Nd, Ns] bf16 (dest-major), cj: [Ns,1], ci: [Nd,1],
       w_all: [Din, R*M] bf16, w_fc: [R*M, Doutp] bf16 (lane-padded), b_fc: [1, Doutp] f32.
       Returns [Nd, Doutp] f32 (caller slices the padded Dout columns)."""
    R, Nd, Ns = a.shape
    Din = x.shape[1]
    RM = w_all.shape[1]
    M = RM // R
    Doutp = w_fc.shape[1]

    # Tile sizes: sublane/lane legal and capped by padded extents.
    # v7x note: halve ts vs the v5e/v6e choice if A tiles approach the 64 MiB VMEM ceiling.
    td = min(td, _round_up(Nd, 8))
    ts = min(ts, _round_up(Ns, LANE))
    Nd_p = _round_up(Nd, td)
    Ns_p = _round_up(Ns, ts)

    # Zero padding: padded source rows/cols contribute nothing to the reduction; padded
    # dest rows are sliced off below.
    x_p = _pad_rows(x, Ns_p)
    cj_p = _pad_rows(cj, Ns_p)
    ci_p = _pad_rows(ci, Nd_p)
    a_p = jnp.pad(a, ((0, 0), (0, Nd_p - Nd), (0, Ns_p - Ns)))

    grid = (Nd_p // td, Ns_p // ts)
    kernel = functools.partial(_encoder_kernel, R=R, M=M)

    out = pl.pallas_call(
        kernel,
        out_shape=jax.ShapeDtypeStruct((Nd_p, Doutp), jnp.float32),
        grid_spec=pltpu.PrefetchScalarGridSpec(
            num_scalar_prefetch=0,
            grid=grid,
            in_specs=[
                pl.BlockSpec((ts, Din), lambda i, s: (s, 0)),      # x (source rows)
                pl.BlockSpec((R, td, ts), lambda i, s: (0, i, s)),  # A (dest x source)
                pl.BlockSpec((ts, 1), lambda i, s: (s, 0)),        # cj
                pl.BlockSpec((td, 1), lambda i, s: (i, 0)),        # ci
                pl.BlockSpec((Din, RM), lambda i, s: (0, 0)),      # W_all   (resident)
                pl.BlockSpec((RM, Doutp), lambda i, s: (0, 0)),    # W_fc    (resident)
                pl.BlockSpec((1, Doutp), lambda i, s: (0, 0)),     # b_fc    (resident)
            ],
            out_specs=pl.BlockSpec((td, Doutp), lambda i, s: (i, 0)),
            scratch_shapes=[pltpu.VMEM((R, td, M), jnp.float32)],  # per-rating accumulator
        ),
        compiler_params=pltpu.CompilerParams(
            dimension_semantics=("parallel", "arbitrary"),
            vmem_limit_bytes=_VMEM_LIMIT,
        ),
    )(x_p, a_p, cj_p, ci_p, w_all, w_fc, b_fc)
    return out[:Nd]


# ---------------------------------------------------------------------------
# Kernel 2: fused, tiled BiDecoder.
#   up  = u_e @ [P_0 | ... | P_{B-1}]                 (one MXU call, K = D)
#   t   = up * tile(v_e, B)                           (VPU)
#   out = t @ W_expand   where W_expand[b*D+d, c] = Wc[b, c]   (one MXU call, K = B*D)
# ---------------------------------------------------------------------------
def _decoder_kernel(u_ref, v_ref, pall_ref, wexp_ref, out_ref, *, B):
    u = u_ref[...].astype(jnp.bfloat16)                                     # [te, D]
    up = jnp.dot(u, pall_ref[...], preferred_element_type=jnp.float32)      # [te, B*D]
    v_rep = jnp.concatenate([v_ref[...]] * B, axis=1)                       # [te, B*D]
    t = (up * v_rep).astype(jnp.bfloat16)
    out_ref[...] = jnp.dot(t, wexp_ref[...],
                           preferred_element_type=jnp.float32)              # [te, Cp]


def bidecoder(u_e, v_e, p_all, w_exp, *, te=512):
    """u_e, v_e: [E, D] f32; p_all: [D, B*D] bf16; w_exp: [B*D, Cp] bf16 -> [E, Cp] f32."""
    E, D = u_e.shape
    BD, Cp = w_exp.shape
    B = BD // D

    te = min(te, _round_up(E, 8))
    E_p = _round_up(E, te)
    u_p = _pad_rows(u_e, E_p)
    v_p = _pad_rows(v_e, E_p)

    kernel = functools.partial(_decoder_kernel, B=B)
    out = pl.pallas_call(
        kernel,
        out_shape=jax.ShapeDtypeStruct((E_p, Cp), jnp.float32),
        grid_spec=pltpu.PrefetchScalarGridSpec(
            num_scalar_prefetch=0,
            grid=(E_p // te,),
            in_specs=[
                pl.BlockSpec((te, D), lambda e: (e, 0)),
                pl.BlockSpec((te, D), lambda e: (e, 0)),
                pl.BlockSpec((D, BD), lambda e: (0, 0)),    # P_all    (resident)
                pl.BlockSpec((BD, Cp), lambda e: (0, 0)),   # W_expand (resident)
            ],
            out_specs=pl.BlockSpec((te, Cp), lambda e: (e, 0)),
        ),
        compiler_params=pltpu.CompilerParams(
            dimension_semantics=("parallel",),
            vmem_limit_bytes=_VMEM_LIMIT,
        ),
    )(u_p, v_p, p_all, w_exp)
    return out[:E]


# ---------------------------------------------------------------------------
# Full Net forward (glue in plain JAX: one-time parameter re-layout + edge gather)
# ---------------------------------------------------------------------------
def net_forward(params, ufeat, ifeat, A_um, cu, cv, eu, ev):
    R, _, M = params["Wu"].shape
    B, D, _ = params["Ps"].shape
    Dout = params["ufc_w"].shape[1]
    C = params["Wc"].shape[1]
    OUTP = _round_up(Dout, LANE)       # lane-dense encoder output width
    CP = _round_up(C, LANE)            # lane-dense decoder output width

    # One-time parameter re-layouts (bf16 MXU operands; biases stay f32).
    Wu_all = jnp.transpose(params["Wu"], (1, 0, 2)).reshape(-1, R * M).astype(jnp.bfloat16)
    Wv_all = jnp.transpose(params["Wv"], (1, 0, 2)).reshape(-1, R * M).astype(jnp.bfloat16)
    ufc_w = _pad_cols(params["ufc_w"], OUTP).astype(jnp.bfloat16)
    ifc_w = _pad_cols(params["ifc_w"], OUTP).astype(jnp.bfloat16)
    ufc_b = _pad_cols(params["ufc_b"], OUTP)
    ifc_b = _pad_cols(params["ifc_b"], OUTP)
    P_all = jnp.transpose(params["Ps"], (1, 0, 2)).reshape(D, B * D).astype(jnp.bfloat16)
    # W_expand[b*D + d, c] = Wc[b, c]  (lets the decoder use one MXU call, no XLU reductions)
    W_exp = _pad_cols(jnp.repeat(params["Wc"], D, axis=0), CP).astype(jnp.bfloat16)

    # Adjacency stored bf16 (0/1 exact). Movie-side uses a one-time XLA transpose so both
    # encoder calls contract on A's lane axis (no per-tile transpose inside the kernel).
    A_um_bf = A_um.astype(jnp.bfloat16)                            # dest = user,  [R, Nu, Nv]
    A_mu_bf = jnp.transpose(A_um, (0, 2, 1)).astype(jnp.bfloat16)  # dest = movie, [R, Nv, Nu]

    cu2 = cu[:, None]
    cv2 = cv[:, None]

    # movie nodes aggregate messages from users; user nodes aggregate from movies.
    movie_out = gcmc_encode(ufeat, A_mu_bf, cu2, cv2, Wu_all, ifc_w, ifc_b)[:, :Dout]
    user_out = gcmc_encode(ifeat, A_um_bf, cv2, cu2, Wv_all, ufc_w, ufc_b)[:, :Dout]

    # TODO(synk): fold this per-edge gather into the decoder (manual DMA row gather) for large E.
    u_e = jnp.take(user_out, eu, axis=0)
    v_e = jnp.take(movie_out, ev, axis=0)

    return bidecoder(u_e, v_e, P_all, W_exp)[:, :C]


# ---------------------------------------------------------------------------
# Pure-JAX f32 reference (for correctness check)
# ---------------------------------------------------------------------------
def net_reference(params, ufeat, ifeat, A_um, cu, cv, eu, ev):
    R = A_um.shape[0]
    lrelu = lambda x: jnp.where(x >= 0, x, 0.1 * x)
    movie_parts, user_parts = [], []
    for r in range(R):
        hu = ufeat @ params["Wu"][r]
        movie_parts.append((A_um[r].T @ (hu * cu[:, None])) * cv[:, None])
        hv = ifeat @ params["Wv"][r]
        user_parts.append((A_um[r] @ (hv * cv[:, None])) * cu[:, None])
    movie_stack = jnp.concatenate(movie_parts, axis=1)
    user_stack = jnp.concatenate(user_parts, axis=1)
    user_out = lrelu(user_stack) @ params["ufc_w"] + params["ufc_b"]
    movie_out = lrelu(movie_stack) @ params["ifc_w"] + params["ifc_b"]
    ue, ve = user_out[eu], movie_out[ev]
    basis = jnp.stack(
        [jnp.sum((ue @ params["Ps"][b]) * ve, axis=-1)
         for b in range(params["Ps"].shape[0])],
        axis=1,
    )
    return basis @ params["Wc"]


if __name__ == "__main__":
    # Small hyper-params consistent with the module's __init__
    R = 3                 # len(args.rating_vals) = num_classes
    SRC_IN = 24           # args.src_in_units
    DST_IN = 24           # args.dst_in_units
    AGG_UNITS = 48        # args.gcn_agg_units
    MSG = AGG_UNITS // R  # per-rating msg units ('stack' accumulation)
    OUT_UNITS = 32        # args.gcn_out_units
    NUM_BASIS = 2         # args.gen_r_num_basis_func
    NU, NV, E = 16, 12, 20

    key = jax.random.PRNGKey(0)
    ks = jax.random.split(key, 12)

    def xavier(k, shape):
        fan_in, fan_out = shape[-2], shape[-1]
        return (jax.random.normal(k, shape, jnp.float32)
                * jnp.sqrt(2.0 / (fan_in + fan_out)))

    params = {
        "Wu": xavier(ks[0], (R, SRC_IN, MSG)),        # per-rating user-side conv weight
        "Wv": xavier(ks[1], (R, DST_IN, MSG)),        # per-rating movie-side conv weight
        "ufc_w": xavier(ks[2], (AGG_UNITS, OUT_UNITS)),
        "ufc_b": jnp.zeros((1, OUT_UNITS), jnp.float32),
        "ifc_w": xavier(ks[3], (AGG_UNITS, OUT_UNITS)),
        "ifc_b": jnp.zeros((1, OUT_UNITS), jnp.float32),
        "Ps": xavier(ks[4], (NUM_BASIS, OUT_UNITS, OUT_UNITS)),
        # combine_basis: nn.Linear(num_basis, num_classes, bias=False); weight [C, B]
        # stored transposed as [B, C] for lane-friendly kernel use.
        "Wc": xavier(ks[5], (NUM_BASIS, R)),
    }

    # Synthetic bipartite graph: rating[u, v] in {0 (no edge), 1..R}
    ratings = jax.random.randint(ks[6], (NU, NV), 0, R + 1)
    A_um = jnp.stack([(ratings == (r + 1)).astype(jnp.float32) for r in range(R)], axis=0)

    deg_u = jnp.sum(jnp.sum(A_um, axis=0), axis=1)          # [NU]
    deg_v = jnp.sum(jnp.sum(A_um, axis=0), axis=0)          # [NV]
    cu = 1.0 / jnp.sqrt(jnp.maximum(deg_u, 1.0))            # cj/ci for user nodes
    cv = 1.0 / jnp.sqrt(jnp.maximum(deg_v, 1.0))            # cj/ci for movie nodes

    ufeat = jax.random.normal(ks[7], (NU, SRC_IN), jnp.float32)
    ifeat = jax.random.normal(ks[8], (NV, DST_IN), jnp.float32)

    # compact_g edge list (edges whose ratings are predicted)
    eu = jax.random.randint(ks[9], (E,), 0, NU)
    ev = jax.random.randint(ks[10], (E,), 0, NV)

    pred = net_forward(params, ufeat, ifeat, A_um, cu, cv, eu, ev)
    pred = jax.block_until_ready(pred)

    ref = jax.block_until_ready(net_reference(params, ufeat, ifeat, A_um, cu, cv, eu, ev))
    assert pred.shape == (E, R), pred.shape
    # bf16 MXU operands (f32 accumulation) -> compare with a magnitude-normalized tolerance.
    err = float(jnp.max(jnp.abs(pred - ref)))
    tol = 5e-2 * float(jnp.max(jnp.abs(ref))) + 1e-3
    assert err < tol, ("mismatch vs reference", err, tol)

    print("KERNEL_OK")
</pallas_src>

<mosaic_0001>
module attributes {stable_mosaic.version = 11 : i64} {
  func.func @_encoder_kernel(%arg0: i32, %arg1: i32, %arg2: memref<128x24xf32, #tpu.memory_space<vmem>>, %arg3: memref<3x16x128xbf16, #tpu.memory_space<vmem>>, %arg4: memref<128x1xf32, #tpu.memory_space<vmem>>, %arg5: memref<16x1xf32, #tpu.memory_space<vmem>>, %arg6: memref<24x48xbf16, #tpu.memory_space<vmem>>, %arg7: memref<48x128xbf16, #tpu.memory_space<vmem>>, %arg8: memref<1x128xf32, #tpu.memory_space<vmem>>, %arg9: memref<16x128xf32, #tpu.memory_space<vmem>>, %arg10: memref<3x16x16xf32, #tpu.memory_space<vmem>>) attributes {dimension_semantics = [#tpu.dimension_semantics<parallel>, #tpu.dimension_semantics<arbitrary>], iteration_bounds = array<i64: 1, 1>, scalar_prefetch = 0 : i64, scratch_operands = 1 : i64, tpu.core_type = #tpu.core_type<tc>, window_params = [{transform_indices = @transform_0, window_bounds = array<i64: 128, 24>}, {transform_indices = @transform_1, window_bounds = array<i64: 3, 16, 128>}, {transform_indices = @transform_2, window_bounds = array<i64: 128, 1>}, {transform_indices = @transform_3, window_bounds = array<i64: 16, 1>}, {pipeline_mode = #tpu.pipeline_mode<synchronous>, transform_indices = @transform_4, window_bounds = array<i64: 24, 48>}, {pipeline_mode = #tpu.pipeline_mode<synchronous>, transform_indices = @transform_5, window_bounds = array<i64: 48, 128>}, {pipeline_mode = #tpu.pipeline_mode<synchronous>, transform_indices = @transform_6, window_bounds = array<i64: 1, 128>}, {transform_indices = @transform_7, window_bounds = array<i64: 16, 128>}]} {
    %c0_i32 = arith.constant 0 : i32
    %0 = arith.cmpi eq, %arg1, %c0_i32 : i32
    %1 = arith.extui %0 : i1 to i32
    %c0_i32_0 = arith.constant 0 : i32
    %2 = arith.cmpi ne, %1, %c0_i32_0 : i32
    scf.if %2 {
      %cst_36 = arith.constant 0.000000e+00 : f32
      %44 = vector.broadcast %cst_36 : f32 to vector<3x16x16xf32>
      %c0_37 = arith.constant 0 : index
      %c0_38 = arith.constant 0 : index
      %c0_39 = arith.constant 0 : index
      %45 = vector.load %arg10[%c0_37, %c0_38, %c0_39] : memref<3x16x16xf32, #tpu.memory_space<vmem>>, vector<3x16x16xf32>
      tpu.vector_store %arg10[%c0_37, %c0_38, %c0_39], %44 {strides = array<i32>} : memref<3x16x16xf32, #tpu.memory_space<vmem>>, vector<3x16x16xf32>,
    } else {
    }
    %c0 = arith.constant 0 : index
    %c0_1 = arith.constant 0 : index
    %3 = vector.load %arg2[%c0, %c0_1] : memref<128x24xf32, #tpu.memory_space<vmem>>, vector<128x24xf32>
    %c0_2 = arith.constant 0 : index
    %c0_3 = arith.constant 0 : index
    %4 = vector.load %arg4[%c0_2, %c0_3] : memref<128x1xf32, #tpu.memory_space<vmem>>, vector<128x1xf32>
    %5 = vector.broadcast %4 : vector<128x1xf32> to vector<128x24xf32>
    %6 = arith.mulf %3, %5 : vector<128x24xf32>
    %7 = arith.truncf %6 : vector<128x24xf32> to vector<128x24xbf16>
    %c0_4 = arith.constant 0 : index
    %c0_5 = arith.constant 0 : index
    %8 = vector.load %arg6[%c0_4, %c0_5] : memref<24x48xbf16, #tpu.memory_space<vmem>>, vector<24x48xbf16>
    %cst = arith.constant dense<0.000000e+00> : vector<128x48xf32>
    %9 = tpu.matmul %7, %8, %cst {dimension_numbers = #tpu.dot_dimension_numbers<[1], [0], [0], [1], [0, 0, 1, 1], [], []>} : vector<128x24xbf16>, vector<24x48xbf16>, vector<128x48xf32> -> vector<128x48xf32>
    %10 = arith.truncf %9 : vector<128x48xf32> to vector<128x48xbf16>
    %c0_6 = arith.constant 0 : index
    %c0_7 = arith.constant 0 : index
    %c0_8 = arith.constant 0 : index
    %11 = vector.load %arg10[%c0_6, %c0_7, %c0_8] : memref<3x16x16xf32, #tpu.memory_space<vmem>>, vector<1x16x16xf32>
    %12 = vector.shape_cast %11 : vector<1x16x16xf32> to vector<16x16xf32>
    %c0_9 = arith.constant 0 : index
    %c0_10 = arith.constant 0 : index
    %c0_11 = arith.constant 0 : index
    %13 = vector.load %arg3[%c0_9, %c0_10, %c0_11] : memref<3x16x128xbf16, #tpu.memory_space<vmem>>, vector<1x16x128xbf16>
    %14 = vector.shape_cast %13 : vector<1x16x128xbf16> to vector<16x128xbf16>
    %15 = vector.extract_strided_slice %10 {offsets = [0, 0], sizes = [128, 16], strides = [1, 1]} : vector<128x48xbf16> to vector<128x16xbf16>
    %cst_12 = arith.constant dense<0.000000e+00> : vector<16x16xf32>
    %16 = tpu.matmul %14, %15, %cst_12 {dimension_numbers = #tpu.dot_dimension_numbers<[1], [0], [0], [1], [0, 0, 1, 1], [], []>} : vector<16x128xbf16>, vector<128x16xbf16>, vector<16x16xf32> -> vector<16x16xf32>
    %17 = arith.addf %12, %16 : vector<16x16xf32>
    %c0_13 = arith.constant 0 : index
    %c0_14 = arith.constant 0 : index
    %c0_15 = arith.constant 0 : index
    %18 = vector.load %arg10[%c0_13, %c0_14, %c0_15] : memref<3x16x16xf32, #tpu.memory_space<vmem>>, vector<1x16x16xf32>
    %19 = vector.shape_cast %18 : vector<1x16x16xf32> to vector<16x16xf32>
    %20 = vector.shape_cast %17 : vector<16x16xf32> to vector<1x16x16xf32>
    tpu.vector_store %arg10[%c0_13, %c0_14, %c0_15], %20 {strides = array<i32>} : memref<3x16x16xf32, #tpu.memory_space<vmem>>, vector<1x16x16xf32>,
    %c1 = arith.constant 1 : index
    %c0_16 = arith.constant 0 : index
    %c0_17 = arith.constant 0 : index
    %21 = vector.load %arg10[%c1, %c0_16, %c0_17] : memref<3x16x16xf32, #tpu.memory_space<vmem>>, vector<1x16x16xf32>
    %22 = vector.shape_cast %21 : vector<1x16x16xf32> to vector<16x16xf32>
    %c1_18 = arith.constant 1 : index
    %c0_19 = arith.constant 0 : index
    %c0_20 = arith.constant 0 : index
    %23 = vector.load %arg3[%c1_18, %c0_19, %c0_20] : memref<3x16x128xbf16, #tpu.memory_space<vmem>>, vector<1x16x128xbf16>
    %24 = vector.shape_cast %23 : vector<1x16x128xbf16> to vector<16x128xbf16>
    %25 = vector.extract_strided_slice %10 {offsets = [0, 16], sizes = [128, 16], strides = [1, 1]} : vector<128x48xbf16> to vector<128x16xbf16>
    %cst_21 = arith.constant dense<0.000000e+00> : vector<16x16xf32>
    %26 = tpu.matmul %24, %25, %cst_21 {dimension_numbers = #tpu.dot_dimension_numbers<[1], [0], [0], [1], [0, 0, 1, 1], [], []>} : vector<16x128xbf16>, vector<128x16xbf16>, vector<16x16xf32> -> vector<16x16xf32>
    %27 = arith.addf %22, %26 : vector<16x16xf32>
    %c1_22 = arith.constant 1 : index
    %c0_23 = arith.constant 0 : index
    %c0_24 = arith.constant 0 : index
    %28 = vector.load %arg10[%c1_22, %c0_23, %c0_24] : memref<3x16x16xf32, #tpu.memory_space<vmem>>, vector<1x16x16xf32>
    %29 = vector.shape_cast %28 : vector<1x16x16xf32> to vector<16x16xf32>
    %30 = vector.shape_cast %27 : vector<16x16xf32> to vector<1x16x16xf32>
    tpu.vector_store %arg10[%c1_22, %c0_23, %c0_24], %30 {strides = array<i32>} : memref<3x16x16xf32, #tpu.memory_space<vmem>>, vector<1x16x16xf32>,
    %c2 = arith.constant 2 : index
    %c0_25 = arith.constant 0 : index
    %c0_26 = arith.constant 0 : index
    %31 = vector.load %arg10[%c2, %c0_25, %c0_26] : memref<3x16x16xf32, #tpu.memory_space<vmem>>, vector<1x16x16xf32>
    %32 = vector.shape_cast %31 : vector<1x16x16xf32> to vector<16x16xf32>
    %c2_27 = arith.constant 2 : index
    %c0_28 = arith.constant 0 : index
    %c0_29 = arith.constant 0 : index
    %33 = vector.load %arg3[%c2_27, %c0_28, %c0_29] : memref<3x16x128xbf16, #tpu.memory_space<vmem>>, vector<1x16x128xbf16>
    %34 = vector.shape_cast %33 : vector<1x16x128xbf16> to vector<16x128xbf16>
    %35 = vector.extract_strided_slice %10 {offsets = [0, 32], sizes = [128, 16], strides = [1, 1]} : vector<128x48xbf16> to vector<128x16xbf16>
    %cst_30 = arith.constant dense<0.000000e+00> : vector<16x16xf32>
    %36 = tpu.matmul %34, %35, %cst_30 {dimension_numbers = #tpu.dot_dimension_numbers<[1], [0], [0], [1], [0, 0, 1, 1], [], []>} : vector<16x128xbf16>, vector<128x16xbf16>, vector<16x16xf32> -> vector<16x16xf32>
    %37 = arith.addf %32, %36 : vector<16x16xf32>
    %c2_31 = arith.constant 2 : index
    %c0_32 = arith.constant 0 : index
    %c0_33 = arith.constant 0 : index
    %38 = vector.load %arg10[%c2_31, %c0_32, %c0_33] : memref<3x16x16xf32, #tpu.memory_space<vmem>>, vector<1x16x16xf32>
    %39 = vector.shape_cast %38 : vector<1x16x16xf32> to vector<16x16xf32>
    %40 = vector.shape_cast %37 : vector<16x16xf32> to vector<1x16x16xf32>
    tpu.vector_store %arg10[%c2_31, %c0_32, %c0_33], %40 {strides = array<i32>} : memref<3x16x16xf32, #tpu.memory_space<vmem>>, vector<1x16x16xf32>,
    %c0_i32_34 = arith.constant 0 : i32
    %41 = arith.cmpi eq, %arg1, %c0_i32_34 : i32
    %42 = arith.extui %41 : i1 to i32
    %c0_i32_35 = arith.constant 0 : i32
    %43 = arith.cmpi ne, %42, %c0_i32_35 : i32
    scf.if %43 {
      %c0_36 = arith.constant 0 : index
      %c0_37 = arith.constant 0 : index
      %c0_38 = arith.constant 0 : index
      %44 = vector.load %arg10[%c0_36, %c0_37, %c0_38] : memref<3x16x16xf32, #tpu.memory_space<vmem>>, vector<1x16x16xf32>
      %45 = vector.shape_cast %44 : vector<1x16x16xf32> to vector<16x16xf32>
      %c1_39 = arith.constant 1 : index
      %c0_40 = arith.constant 0 : index
      %c0_41 = arith.constant 0 : index
      %46 = vector.load %arg10[%c1_39, %c0_40, %c0_41] : memref<3x16x16xf32, #tpu.memory_space<vmem>>, vector<1x16x16xf32>
      %47 = vector.shape_cast %46 : vector<1x16x16xf32> to vector<16x16xf32>
      %c2_42 = arith.constant 2 : index
      %c0_43 = arith.constant 0 : index
      %c0_44 = arith.constant 0 : index
      %48 = vector.load %arg10[%c2_42, %c0_43, %c0_44] : memref<3x16x16xf32, #tpu.memory_space<vmem>>, vector<1x16x16xf32>
      %49 = vector.shape_cast %48 : vector<1x16x16xf32> to vector<16x16xf32>
      %50 = tpu.concatenate %45, %47, %49 in 1 : vector<16x16xf32>, vector<16x16xf32>, vector<16x16xf32> -> vector<16x48xf32>
      %c0_45 = arith.constant 0 : index
      %c0_46 = arith.constant 0 : index
      %51 = vector.load %arg5[%c0_45, %c0_46] : memref<16x1xf32, #tpu.memory_space<vmem>>, vector<16x1xf32>
      %52 = vector.broadcast %51 : vector<16x1xf32> to vector<16x48xf32>
      %53 = arith.mulf %50, %52 : vector<16x48xf32>
      %cst_47 = arith.constant 0.000000e+00 : f32
      %54 = vector.broadcast %cst_47 : f32 to vector<16x48xf32>
      %55 = arith.cmpf oge, %53, %54 : vector<16x48xf32>
      %cst_48 = arith.constant 1.000000e-01 : f32
      %56 = vector.broadcast %cst_48 : f32 to vector<16x48xf32>
      %57 = arith.mulf %56, %53 : vector<16x48xf32>
      %58 = arith.select %55, %53, %57 : vector<16x48xi1>, vector<16x48xf32>
      %59 = arith.truncf %58 : vector<16x48xf32> to vector<16x48xbf16>
      %c0_49 = arith.constant 0 : index
      %c0_50 = arith.constant 0 : index
      %60 = vector.load %arg7[%c0_49, %c0_50] : memref<48x128xbf16, #tpu.memory_space<vmem>>, vector<48x128xbf16>
      %cst_51 = arith.constant dense<0.000000e+00> : vector<16x128xf32>
      %61 = tpu.matmul %59, %60, %cst_51 {dimension_numbers = #tpu.dot_dimension_numbers<[1], [0], [0], [1], [0, 0, 1, 1], [], []>} : vector<16x48xbf16>, vector<48x128xbf16>, vector<16x128xf32> -> vector<16x128xf32>
      %c0_52 = arith.constant 0 : index
      %c0_53 = arith.constant 0 : index
      %62 = vector.load %arg8[%c0_52, %c0_53] : memref<1x128xf32, #tpu.memory_space<vmem>>, vector<1x128xf32>
      %63 = vector.broadcast %62 : vector<1x128xf32> to vector<16x128xf32>
      %64 = arith.addf %61, %63 : vector<16x128xf32>
      %c0_54 = arith.constant 0 : index
      %c0_55 = arith.constant 0 : index
      %65 = vector.load %arg9[%c0_54, %c0_55] : memref<16x128xf32, #tpu.memory_space<vmem>>, vector<16x128xf32>
      tpu.vector_store %arg9[%c0_54, %c0_55], %64 {strides = array<i32>} : memref<16x128xf32, #tpu.memory_space<vmem>>, vector<16x128xf32>,
    } else {
    }
    return
  }
  func.func @transform_0(%arg0: i32, %arg1: i32) -> (i32, i32) {
    %c0_i32 = arith.constant 0 : i32
    %c0_i32_0 = arith.constant 0 : i32
    return %arg1, %c0_i32 : i32, i32
  }
  func.func @transform_1(%arg0: i32, %arg1: i32) -> (i32, i32, i32) {
    %c0_i32 = arith.constant 0 : i32
    %c0_i32_0 = arith.constant 0 : i32
    return %c0_i32, %arg0, %arg1 : i32, i32, i32
  }
  func.func @transform_2(%arg0: i32, %arg1: i32) -> (i32, i32) {
    %c0_i32 = arith.constant 0 : i32
    %c0_i32_0 = arith.constant 0 : i32
    return %arg1, %c0_i32 : i32, i32
  }
  func.func @transform_3(%arg0: i32, %arg1: i32) -> (i32, i32) {
    %c0_i32 = arith.constant 0 : i32
    %c0_i32_0 = arith.constant 0 : i32
    return %arg0, %c0_i32 : i32, i32
  }
  func.func @transform_4(%arg0: i32, %arg1: i32) -> (i32, i32) {
    %c0_i32 = arith.constant 0 : i32
    %c0_i32_0 = arith.constant 0 : i32
    %c0_i32_1 = arith.constant 0 : i32
    return %c0_i32, %c0_i32_0 : i32, i32
  }
  func.func @transform_5(%arg0: i32, %arg1: i32) -> (i32, i32) {
    %c0_i32 = arith.constant 0 : i32
    %c0_i32_0 = arith.constant 0 : i32
    %c0_i32_1 = arith.constant 0 : i32
    return %c0_i32, %c0_i32_0 : i32, i32
  }
  func.func @transform_6(%arg0: i32, %arg1: i32) -> (i32, i32) {
    %c0_i32 = arith.constant 0 : i32
    %c0_i32_0 = arith.constant 0 : i32
    %c0_i32_1 = arith.constant 0 : i32
    return %c0_i32, %c0_i32_0 : i32, i32
  }
  func.func @transform_7(%arg0: i32, %arg1: i32) -> (i32, i32) {
    %c0_i32 = arith.constant 0 : i32
    %c0_i32_0 = arith.constant 0 : i32
    return %arg0, %c0_i32 : i32, i32
  }
}

</mosaic_0001>

<llo_original>
// kernel: tpu_custom_call.1
$region0: #{tpu_custom_call.1}
  #allocation0 [shape = 'u32[]', space=smem, size = 0x4, offset = 0x4, fixed_abs, tag = 'smem constant byte address 0x4 - core index']
  #allocation1 [shape = 'u32[144,128]{1,0:T(1,128)}', space=vmem, size = 0x12000, scoped, tag = 'internal scratch']
  #allocation2 [shape = 'f32[3,16,16]{2,1,0:T(8,128)}', space=vmem, size = 0x6000, scoped, tag = 'scratch operand']
  %s0 = inlined_call_operand.vmem [shape: f32[128,24], index: 0, kind: input, shape index: {}]
  %s1 = inlined_call_operand.vmem [shape: bf16[3,16,128], index: 1, kind: input, shape index: {}]
  %s2 = inlined_call_operand.vmem [shape: f32[128,1], index: 2, kind: input, shape index: {}]
  %s3 = inlined_call_operand.vmem [shape: f32[16,1], index: 3, kind: input, shape index: {}]
  %s4 = inlined_call_operand.vmem [shape: bf16[24,48], index: 4, kind: input, shape index: {}]
  %s5 = inlined_call_operand.vmem [shape: bf16[48,128], index: 5, kind: input, shape index: {}]
  %s6 = inlined_call_operand.vmem [shape: f32[1,128], index: 6, kind: input, shape index: {}]
  %s7 = inlined_call_operand.hbm [shape: f32[16,128], index: 7, kind: output, shape index: {}]
  %s8 = sld [smem:[#allocation0]]
  $region46: #{tpu_custom_call.1} parent=0
    _
  %s10 = ssub.s32 1, %s8
  %s11 = scalar_select 0, %s10, %s8
  $region1: #{tpu_custom_call.1} parent=0
    #allocation3 [shape = 'u8[8192]{0}', space=vmem, size = 0x2000, scoped, tag = 'output window, operand 0, single buffered']
    #allocation4 [shape = 's32[1]{0}', space=sflag, size = 0x4, scoped, tag = 'scoped memory for tpu_custom_call.1']
    %12 = vsyncpa [#allocation4], 0
    // Predicated region
    $region2: #{tpu_custom_call.1} parent=1 // pred_check
      _
    $region3: #{tpu_custom_call.1} parent=1 // pred_check_branch
      %14 = sbr.rel (0) target = $region5
    $region4: #{tpu_custom_call.1} parent=1 // pred_region
      _
    $region5: #{tpu_custom_call.1} parent=1 // pred_fallthru
      _
    // Predicated region
    $region6: #{tpu_custom_call.1} parent=1 // pred_check
      _
    $region7: #{tpu_custom_call.1} parent=1 // pred_check_branch
      %16 = sbr.rel (0) target = $region9
    $region8: #{tpu_custom_call.1} parent=1 // pred_region
      _
    $region9: #{tpu_custom_call.1} parent=1 // pred_fallthru
      _
    // Predicated region
    $region10: #{tpu_custom_call.1} parent=1 // pred_check
      _
    $region11: #{tpu_custom_call.1} parent=1 // pred_check_branch
      %18 = sbr.rel (0) target = $region13
    $region12: #{tpu_custom_call.1} parent=1 // pred_region
      _
    $region13: #{tpu_custom_call.1} parent=1 // pred_fallthru
      _
    // Predicated region
    $region14: #{tpu_custom_call.1} parent=1 // pred_check
      _
    $region15: #{tpu_custom_call.1} parent=1 // pred_check_branch
      %20 = sbr.rel (0) target = $region17
    $region16: #{tpu_custom_call.1} parent=1 // pred_region
      _
    $region17: #{tpu_custom_call.1} parent=1 // pred_fallthru
      _
    // Predicated region
    $region18: #{tpu_custom_call.1} parent=1 // pred_check
      _
    $region19: #{tpu_custom_call.1} parent=1 // pred_check_branch
      %22 = sbr.rel (0) target = $region21
    $region20: #{tpu_custom_call.1} parent=1 // pred_region
      _
    $region21: #{tpu_custom_call.1} parent=1 // pred_fallthru
      _
    // Predicated region
    $region22: #{tpu_custom_call.1} parent=1 // pred_check
      _
    $region23: #{tpu_custom_call.1} parent=1 // pred_check_branch
      %24 = sbr.rel (0) target = $region25
    $region24: #{tpu_custom_call.1} parent=1 // pred_region
      _
    $region25: #{tpu_custom_call.1} parent=1 // pred_fallthru
      _
    // Predicated region
    $region26: #{tpu_custom_call.1} parent=1 // pred_check
      _
    $region27: #{tpu_custom_call.1} parent=1 // pred_check_branch
      %26 = sbr.rel (0) target = $region29
    $region28: #{tpu_custom_call.1} parent=1 // pred_region
      _
    $region29: #{tpu_custom_call.1} parent=1 // pred_fallthru
      _
    %p28 = scmp.eq.s32.totalorder 0, 0
    // Predicated region
    $region30: #{tpu_custom_call.1} parent=1 // pred_check
      %p29 = pneg %p28
    $region31: #{tpu_custom_call.1} parent=1 // pred_check_branch
      %31 = sbr.rel (%p29) target = $region33
    $region32: #{tpu_custom_call.1} parent=1 // pred_region
      %vm32 = vcmask 130048
      %33 = vst.msk [vmem:[#allocation2] sm:$0xff] %vm32, 0.0
      %34 = vst.msk [vmem:[#allocation2 + $0x8] sm:$0xff] %vm32, 0.0
      %35 = vst.msk [vmem:[#allocation2 + $0x10] sm:$0xff] %vm32, 0.0
      %36 = vst.msk [vmem:[#allocation2 + $0x18] sm:$0xff] %vm32, 0.0
      %37 = vst.msk [vmem:[#allocation2 + $0x20] sm:$0xff] %vm32, 0.0
      %38 = vst.msk [vmem:[#allocation2 + $0x28] sm:$0xff] %vm32, 0.0
    $region33: #{tpu_custom_call.1} parent=1 // pred_fallthru
      _
    %v39 = vld [vmem:[%s0] sm:$0xff]
    %v40 = vld [vmem:[%s0 + $0x8] sm:$0xff]
    %v41 = vld [vmem:[%s0 + $0x10] sm:$0xff]
    %v42 = vld [vmem:[%s0 + $0x18] sm:$0xff]
    %v43 = vld [vmem:[%s0 + $0x20] sm:$0xff]
    %v44 = vld [vmem:[%s0 + $0x28] sm:$0xff]
    %v45 = vld [vmem:[%s0 + $0x30] sm:$0xff]
    %v46 = vld [vmem:[%s0 + $0x38] sm:$0xff]
    %v47 = vld [vmem:[%s0 + $0x40] sm:$0xff]
    %v48 = vld [vmem:[%s0 + $0x48] sm:$0xff]
    %v49 = vld [vmem:[%s0 + $0x50] sm:$0xff]
    %v50 = vld [vmem:[%s0 + $0x58] sm:$0xff]
    %v51 = vld [vmem:[%s0 + $0x60] sm:$0xff]
    %v52 = vld [vmem:[%s0 + $0x68] sm:$0xff]
    %v53 = vld [vmem:[%s0 + $0x70] sm:$0xff]
    %v54 = vld [vmem:[%s0 + $0x78] sm:$0xff]
    %v55 = vld [vmem:[%s2] sm:$0xff]
    %v56 = vld [vmem:[%s2 + $0x8] sm:$0xff]
    %v57 = vld [vmem:[%s2 + $0x10] sm:$0xff]
    %v58 = vld [vmem:[%s2 + $0x18] sm:$0xff]
    %v59 = vld [vmem:[%s2 + $0x20] sm:$0xff]
    %v60 = vld [vmem:[%s2 + $0x28] sm:$0xff]
    %v61 = vld [vmem:[%s2 + $0x30] sm:$0xff]
    %v62 = vld [vmem:[%s2 + $0x38] sm:$0xff]
    %v63 = vld [vmem:[%s2 + $0x40] sm:$0xff]
    %v64 = vld [vmem:[%s2 + $0x48] sm:$0xff]
    %v65 = vld [vmem:[%s2 + $0x50] sm:$0xff]
    %v66 = vld [vmem:[%s2 + $0x58] sm:$0xff]
    %v67 = vld [vmem:[%s2 + $0x60] sm:$0xff]
    %v68 = vld [vmem:[%s2 + $0x68] sm:$0xff]
    %v69 = vld [vmem:[%s2 + $0x70] sm:$0xff]
    %v70 = vld [vmem:[%s2 + $0x78] sm:$0xff]
    %72 = vset.pattern.permute.xlu0 0
    %73 = vperm.xlu0 %72, %v55
    %v74 = vpop.permute.xlu0 %73
    %77 = vset.pattern.permute.xlu0 0
    %78 = vperm.xlu0 %77, %v56
    %v79 = vpop.permute.xlu0 %78
    %82 = vset.pattern.permute.xlu0 0
    %83 = vperm.xlu0 %82, %v57
    %v84 = vpop.permute.xlu0 %83
    %87 = vset.pattern.permute.xlu0 0
    %88 = vperm.xlu0 %87, %v58
    %v89 = vpop.permute.xlu0 %88
    %92 = vset.pattern.permute.xlu0 0
    %93 = vperm.xlu0 %92, %v59
    %v94 = vpop.permute.xlu0 %93
    %97 = vset.pattern.permute.xlu0 0
    %98 = vperm.xlu0 %97, %v60
    %v99 = vpop.permute.xlu0 %98
    %102 = vset.pattern.permute.xlu0 0
    %103 = vperm.xlu0 %102, %v61
    %v104 = vpop.permute.xlu0 %103
    %107 = vset.pattern.permute.xlu0 0
    %108 = vperm.xlu0 %107, %v62
    %v109 = vpop.permute.xlu0 %108
    %112 = vset.pattern.permute.xlu0 0
    %113 = vperm.xlu0 %112, %v63
    %v114 = vpop.permute.xlu0 %113
    %117 = vset.pattern.permute.xlu0 0
    %118 = vperm.xlu0 %117, %v64
    %v119 = vpop.permute.xlu0 %118
    %122 = vset.pattern.permute.xlu0 0
    %123 = vperm.xlu0 %122, %v65
    %v124 = vpop.permute.xlu0 %123
    %127 = vset.pattern.permute.xlu0 0
    %128 = vperm.xlu0 %127, %v66
    %v129 = vpop.permute.xlu0 %128
    %132 = vset.pattern.permute.xlu0 0
    %133 = vperm.xlu0 %132, %v67
    %v134 = vpop.permute.xlu0 %133
    %137 = vset.pattern.permute.xlu0 0
    %138 = vperm.xlu0 %137, %v68
    %v139 = vpop.permute.xlu0 %138
    %142 = vset.pattern.permute.xlu0 0
    %143 = vperm.xlu0 %142, %v69
    %v144 = vpop.permute.xlu0 %143
    %147 = vset.pattern.permute.xlu0 0
    %148 = vperm.xlu0 %147, %v70
    %v149 = vpop.permute.xlu0 %148
    %v151 = vmul.f32 %v39, %v74
    %v152 = vmul.f32 %v40, %v79
    %v153 = vmul.f32 %v41, %v84
    %v154 = vmul.f32 %v42, %v89
    %v155 = vmul.f32 %v43, %v94
    %v156 = vmul.f32 %v44, %v99
    %v157 = vmul.f32 %v45, %v104
    %v158 = vmul.f32 %v46, %v109
    %v159 = vmul.f32 %v47, %v114
    %v160 = vmul.f32 %v48, %v119
    %v161 = vmul.f32 %v49, %v124
    %v162 = vmul.f32 %v50, %v129
    %v163 = vmul.f32 %v51, %v134
    %v164 = vmul.f32 %v52, %v139
    %v165 = vmul.f32 %v53, %v144
    %v166 = vmul.f32 %v54, %v149
    %v167 = vpack.c.bf16 %v152, %v151
    %v168 = vpack.c.bf16 %v154, %v153
    %v169 = vpack.c.bf16 %v156, %v155
    %v170 = vpack.c.bf16 %v158, %v157
    %v171 = vpack.c.bf16 %v160, %v159
    %v172 = vpack.c.bf16 %v162, %v161
    %v173 = vpack.c.bf16 %v164, %v163
    %v174 = vpack.c.bf16 %v166, %v165
    %v175 = vld [vmem:[%s4] sm:$0xf]
    %v176 = vld [vmem:[%s4 + $0x4] sm:$0xf]
    %v177 = vld [vmem:[%s4 + $0x8] sm:$0xf]
    %v181 = vunpack.c.l.b16 %v175
    %v182 = vunpack.c.l.b16 %v176
    %v183 = vunpack.c.l.b16 %v177
    %v184 = vpack.c.b16 %v182, %v181
    %v185 = vpack.c.b16 %v183, %v183
    %vm187 = vcmask 195584
    %v189 = vsel %vm187, %v167, 0
    %v192 = vsel %vm187, %v168, 0
    %v195 = vsel %vm187, %v169, 0
    %v198 = vsel %vm187, %v170, 0
    %v201 = vsel %vm187, %v171, 0
    %v204 = vsel %vm187, %v172, 0
    %v207 = vsel %vm187, %v173, 0
    %v210 = vsel %vm187, %v174, 0
    %vm212 = vcmask 1043456
    %v214 = vsel %vm212, %v185, 0
    %216 = vmatprep.subr.bf16.mxu0 0
    %217 = vmatpush1.bf16.msra.mxu0 %v184
    %218 = vmatprep.subr.bf16.mxu0 0
    %219 = vmatpush1.bf16.msra.mxu0 %v214
    %220 = vmatprep.subr.bf16.mxu0 0
    %221 = vmatpush1.bf16.msra.mxu0 0
    %222 = vmatprep.subr.bf16.mxu0 0
    %223 = vmatpush1.bf16.msra.mxu0 0
    %224 = vmatprep.subr.bf16.mxu0 0
    %225 = vmatpush1.bf16.msra.mxu0 0
    %226 = vmatprep.subr.bf16.mxu0 0
    %227 = vmatpush1.bf16.msra.mxu0 0
    %228 = vmatprep.subr.bf16.mxu0 0
    %229 = vmatpush1.bf16.msra.mxu0 0
    %230 = vmatprep.subr.bf16.mxu0 0
    %231 = vmatpush1.bf16.msra.mxu0 0
    %232 = vmatprep.subr.bf16.mxu0 0
    %233 = vmatpush1.bf16.msra.mxu0 0
    %234 = vmatprep.subr.bf16.mxu0 0
    %235 = vmatpush1.bf16.msra.mxu0 0
    %236 = vmatprep.subr.bf16.mxu0 0
    %237 = vmatpush1.bf16.msra.mxu0 0
    %238 = vmatprep.subr.bf16.mxu0 0
    %239 = vmatpush1.bf16.msra.mxu0 0
    %240 = vmatprep.subr.bf16.mxu0 0
    %241 = vmatpush1.bf16.msra.mxu0 0
    %242 = vmatprep.subr.bf16.mxu0 0
    %243 = vmatpush1.bf16.msra.mxu0 0
    %244 = vmatprep.subr.bf16.mxu0 0
    %245 = vmatpush1.bf16.msra.mxu0 0
    %246 = vmatprep.subr.bf16.mxu0 0
    %247 = vmatpush1.bf16.msra.mxu0 0
    %248 = vmatprep.mubr.bf16.mxu0 0
    %249 = vmatmul.mubr.bf16.gmra.mrb[0].mxu0 %v189
    %v250 = vpop.f32.mrb[0].mxu0
    %v251 = vadd.f32 0.0, %v250
    %v252 = vpop.f32.mrb[0].mxu0
    %v253 = vpop.f32.mrb[0].mxu0
    %v254 = vadd.f32 0.0, %v253
    %v255 = vpop.f32.mrb[0].mxu0
    %256 = vmatprep.mubr.bf16.mxu0 0
    %257 = vmatmul.mubr.bf16.gmra.mrb[0].mxu0 %v192
    %v258 = vpop.f32.mrb[0].mxu0
    %v259 = vadd.f32 0.0, %v258
    %v260 = vpop.f32.mrb[0].mxu0
    %v261 = vpop.f32.mrb[0].mxu0
    %v262 = vadd.f32 0.0, %v261
    %v263 = vpop.f32.mrb[0].mxu0
    %264 = vmatprep.mubr.bf16.mxu0 0
    %265 = vmatmul.mubr.bf16.gmra.mrb[0].mxu0 %v195
    %v266 = vpop.f32.mrb[0].mxu0
    %v267 = vadd.f32 0.0, %v266
    %v268 = vpop.f32.mrb[0].mxu0
    %v269 = vpop.f32.mrb[0].mxu0
    %v270 = vadd.f32 0.0, %v269
    %v271 = vpop.f32.mrb[0].mxu0
    %272 = vmatprep.mubr.bf16.mxu0 0
    %273 = vmatmul.mubr.bf16.gmra.mrb[0].mxu0 %v198
    %v274 = vpop.f32.mrb[0].mxu0
    %v275 = vadd.f32 0.0, %v274
    %v276 = vpop.f32.mrb[0].mxu0
    %v277 = vpop.f32.mrb[0].mxu0
    %v278 = vadd.f32 0.0, %v277
    %v279 = vpop.f32.mrb[0].mxu0
    %280 = vmatprep.mubr.bf16.mxu0 0
    %281 = vmatmul.mubr.bf16.gmra.mrb[0].mxu0 %v201
    %v282 = vpop.f32.mrb[0].mxu0
    %v283 = vadd.f32 0.0, %v282
    %v284 = vpop.f32.mrb[0].mxu0
    %v285 = vpop.f32.mrb[0].mxu0
    %v286 = vadd.f32 0.0, %v285
    %v287 = vpop.f32.mrb[0].mxu0
    %288 = vmatprep.mubr.bf16.mxu0 0
    %289 = vmatmul.mubr.bf16.gmra.mrb[0].mxu0 %v204
    %v290 = vpop.f32.mrb[0].mxu0
    %v291 = vadd.f32 0.0, %v290
    %v292 = vpop.f32.mrb[0].mxu0
    %v293 = vpop.f32.mrb[0].mxu0
    %v294 = vadd.f32 0.0, %v293
    %v295 = vpop.f32.mrb[0].mxu0
    %296 = vmatprep.mubr.bf16.mxu0 0
    %297 = vmatmul.mubr.bf16.gmra.mrb[0].mxu0 %v207
    %v298 = vpop.f32.mrb[0].mxu0
    %v299 = vadd.f32 0.0, %v298
    %v300 = vpop.f32.mrb[0].mxu0
    %v301 = vpop.f32.mrb[0].mxu0
    %v302 = vadd.f32 0.0, %v301
    %v303 = vpop.f32.mrb[0].mxu0
    %304 = vmatprep.mubr.bf16.mxu0 0
    %305 = vmatmul.mubr.bf16.gmra.mrb[0].mxu0 %v210
    %v306 = vpop.f32.mrb[0].mxu0
    %v307 = vadd.f32 0.0, %v306
    %v308 = vpop.f32.mrb[0].mxu0
    %v309 = vpop.f32.mrb[0].mxu0
    %v310 = vadd.f32 0.0, %v309
    %v311 = vpop.f32.mrb[0].mxu0
    %312 = vdwg.mxu0
    %v313 = vpack.c.bf16 %v254, %v251
    %v314 = vpack.c.bf16 %v262, %v259
    %v315 = vpack.c.bf16 %v270, %v267
    %v316 = vpack.c.bf16 %v278, %v275
    %v317 = vpack.c.bf16 %v286, %v283
    %v318 = vpack.c.bf16 %v294, %v291
    %v319 = vpack.c.bf16 %v302, %v299
    %v320 = vpack.c.bf16 %v310, %v307
    %v321 = vld [vmem:[#allocation2] sm:$0xff]
    %v322 = vld [vmem:[#allocation2 + $0x8] sm:$0xff]
    %v323 = vld [vmem:[%s1] sm:$0xf]
    %v324 = vld [vmem:[%s1 + $0x4] sm:$0xf]
    %v327 = vunpack.c.l.b16 %v323
    %v328 = vunpack.c.l.b16 %v324
    %v329 = vpack.c.b16 %v328, %v327
    %331 = vmatprep.subr.bf16.mxu0 0
    %332 = vmatpush1.bf16.msra.mxu0 %v313
    %333 = vmatprep.subr.bf16.mxu0 0
    %334 = vmatpush1.bf16.msra.mxu0 %v314
    %335 = vmatprep.subr.bf16.mxu0 0
    %336 = vmatpush1.bf16.msra.mxu0 %v315
    %337 = vmatprep.subr.bf16.mxu0 0
    %338 = vmatpush1.bf16.msra.mxu0 %v316
    %339 = vmatprep.subr.bf16.mxu0 0
    %340 = vmatpush1.bf16.msra.mxu0 %v317
    %341 = vmatprep.subr.bf16.mxu0 0
    %342 = vmatpush1.bf16.msra.mxu0 %v318
    %343 = vmatprep.subr.bf16.mxu0 0
    %344 = vmatpush1.bf16.msra.mxu0 %v319
    %345 = vmatprep.subr.bf16.mxu0 0
    %346 = vmatpush1.bf16.msra.mxu0 %v320
    %347 = vmatprep.subr.bf16.mxu0 0
    %348 = vmatpush1.bf16.msra.mxu0 0
    %349 = vmatprep.subr.bf16.mxu0 0
    %350 = vmatpush1.bf16.msra.mxu0 0
    %351 = vmatprep.subr.bf16.mxu0 0
    %352 = vmatpush1.bf16.msra.mxu0 0
    %353 = vmatprep.subr.bf16.mxu0 0
    %354 = vmatpush1.bf16.msra.mxu0 0
    %355 = vmatprep.subr.bf16.mxu0 0
    %356 = vmatpush1.bf16.msra.mxu0 0
    %357 = vmatprep.subr.bf16.mxu0 0
    %358 = vmatpush1.bf16.msra.mxu0 0
    %359 = vmatprep.subr.bf16.mxu0 0
    %360 = vmatpush1.bf16.msra.mxu0 0
    %361 = vmatprep.subr.bf16.mxu0 0
    %362 = vmatpush1.bf16.msra.mxu0 0
    %363 = vmatprep.mubr.bf16.mxu0 0
    %364 = vmatmul.mubr.bf16.gmra.mrb[0].mxu0 %v329
    %v365 = vpop.f32.mrb[0].mxu0
    %v366 = vadd.f32 0.0, %v365
    %v367 = vpop.f32.mrb[0].mxu0
    %v368 = vpop.f32.mrb[0].mxu0
    %v369 = vadd.f32 0.0, %v368
    %v370 = vpop.f32.mrb[0].mxu0
    %371 = vdwg.mxu0
    %v372 = vadd.f32 %v321, %v366
    %v373 = vadd.f32 %v322, %v369
    %vm374 = vcmask 130048
    %375 = vst.msk [vmem:[#allocation2] sm:$0xff] %vm374, %v372
    %376 = vst.msk [vmem:[#allocation2 + $0x8] sm:$0xff] %vm374, %v373
    %s377 = scalar_lea.vmem [#allocation2], 16
    %v378 = vld [vmem:[%s377] sm:$0xff]
    %v379 = vld [vmem:[%s377 + $0x8] sm:$0xff]
    %s380 = scalar_lea.vmem %s1, 8
    %v381 = vld [vmem:[%s380] sm:$0xf]
    %v382 = vld [vmem:[%s380 + $0x4] sm:$0xf]
    %v385 = vunpack.c.l.b16 %v381
    %v386 = vunpack.c.l.b16 %v382
    %v387 = vpack.c.b16 %v386, %v385
    %397 = vrot.lane.b32.xlu0 %v313, 112
    %v398 = vpop.permute.xlu0 %397
    %399 = vrot.lane.b32.xlu0 %v314, 112
    %v400 = vpop.permute.xlu0 %399
    %401 = vrot.lane.b32.xlu0 %v315, 112
    %v402 = vpop.permute.xlu0 %401
    %403 = vrot.lane.b32.xlu0 %v316, 112
    %v404 = vpop.permute.xlu0 %403
    %405 = vrot.lane.b32.xlu0 %v317, 112
    %v406 = vpop.permute.xlu0 %405
    %407 = vrot.lane.b32.xlu0 %v318, 112
    %v408 = vpop.permute.xlu0 %407
    %409 = vrot.lane.b32.xlu0 %v319, 112
    %v410 = vpop.permute.xlu0 %409
    %411 = vrot.lane.b32.xlu0 %v320, 112
    %v412 = vpop.permute.xlu0 %411
    %421 = vmatprep.subr.bf16.mxu0 0
    %422 = vmatpush1.bf16.msra.mxu0 %v398
    %423 = vmatprep.subr.bf16.mxu0 0
    %424 = vmatpush1.bf16.msra.mxu0 %v400
    %425 = vmatprep.subr.bf16.mxu0 0
    %426 = vmatpush1.bf16.msra.mxu0 %v402
    %427 = vmatprep.subr.bf16.mxu0 0
    %428 = vmatpush1.bf16.msra.mxu0 %v404
    %429 = vmatprep.subr.bf16.mxu0 0
    %430 = vmatpush1.bf16.msra.mxu0 %v406
    %431 = vmatprep.subr.bf16.mxu0 0
    %432 = vmatpush1.bf16.msra.mxu0 %v408
    %433 = vmatprep.subr.bf16.mxu0 0
    %434 = vmatpush1.bf16.msra.mxu0 %v410
    %435 = vmatprep.subr.bf16.mxu0 0
    %436 = vmatpush1.bf16.msra.mxu0 %v412
    %437 = vmatprep.subr.bf16.mxu0 0
    %438 = vmatpush1.bf16.msra.mxu0 0
    %439 = vmatprep.subr.bf16.mxu0 0
    %440 = vmatpush1.bf16.msra.mxu0 0
    %441 = vmatprep.subr.bf16.mxu0 0
    %442 = vmatpush1.bf16.msra.mxu0 0
    %443 = vmatprep.subr.bf16.mxu0 0
    %444 = vmatpush1.bf16.msra.mxu0 0
    %445 = vmatprep.subr.bf16.mxu0 0
    %446 = vmatpush1.bf16.msra.mxu0 0
    %447 = vmatprep.subr.bf16.mxu0 0
    %448 = vmatpush1.bf16.msra.mxu0 0
    %449 = vmatprep.subr.bf16.mxu0 0
    %450 = vmatpush1.bf16.msra.mxu0 0
    %451 = vmatprep.subr.bf16.mxu0 0
    %452 = vmatpush1.bf16.msra.mxu0 0
    %453 = vmatprep.mubr.bf16.mxu0 0
    %454 = vmatmul.mubr.bf16.gmra.mrb[0].mxu0 %v387
    %v455 = vpop.f32.mrb[0].mxu0
    %v456 = vadd.f32 0.0, %v455
    %v457 = vpop.f32.mrb[0].mxu0
    %v458 = vpop.f32.mrb[0].mxu0
    %v459 = vadd.f32 0.0, %v458
    %v460 = vpop.f32.mrb[0].mxu0
    %461 = vdwg.mxu0
    %v462 = vadd.f32 %v378, %v456
    %v463 = vadd.f32 %v379, %v459
    %464 = vst.msk [vmem:[%s377] sm:$0xff] %vm374, %v462
    %465 = vst.msk [vmem:[%s377 + $0x8] sm:$0xff] %vm374, %v463
    %s466 = scalar_lea.vmem [#allocation2], 32
    %v467 = vld [vmem:[%s466] sm:$0xff]
    %v468 = vld [vmem:[%s466 + $0x8] sm:$0xff]
    %s469 = scalar_lea.vmem %s1, 16
    %v470 = vld [vmem:[%s469] sm:$0xf]
    %v471 = vld [vmem:[%s469 + $0x4] sm:$0xf]
    %v474 = vunpack.c.l.b16 %v470
    %v475 = vunpack.c.l.b16 %v471
    %v476 = vpack.c.b16 %v475, %v474
    %478 = vrot.lane.b32.xlu0 %v313, 96
    %v479 = vpop.permute.xlu0 %478
    %480 = vrot.lane.b32.xlu0 %v314, 96
    %v481 = vpop.permute.xlu0 %480
    %482 = vrot.lane.b32.xlu0 %v315, 96
    %v483 = vpop.permute.xlu0 %482
    %484 = vrot.lane.b32.xlu0 %v316, 96
    %v485 = vpop.permute.xlu0 %484
    %486 = vrot.lane.b32.xlu0 %v317, 96
    %v487 = vpop.permute.xlu0 %486
    %488 = vrot.lane.b32.xlu0 %v318, 96
    %v489 = vpop.permute.xlu0 %488
    %490 = vrot.lane.b32.xlu0 %v319, 96
    %v491 = vpop.permute.xlu0 %490
    %492 = vrot.lane.b32.xlu0 %v320, 96
    %v493 = vpop.permute.xlu0 %492
    %502 = vmatprep.subr.bf16.mxu0 0
    %503 = vmatpush1.bf16.msra.mxu0 %v479
    %504 = vmatprep.subr.bf16.mxu0 0
    %505 = vmatpush1.bf16.msra.mxu0 %v481
    %506 = vmatprep.subr.bf16.mxu0 0
    %507 = vmatpush1.bf16.msra.mxu0 %v483
    %508 = vmatprep.subr.bf16.mxu0 0
    %509 = vmatpush1.bf16.msra.mxu0 %v485
    %510 = vmatprep.subr.bf16.mxu0 0
    %511 = vmatpush1.bf16.msra.mxu0 %v487
    %512 = vmatprep.subr.bf16.mxu0 0
    %513 = vmatpush1.bf16.msra.mxu0 %v489
    %514 = vmatprep.subr.bf16.mxu0 0
    %515 = vmatpush1.bf16.msra.mxu0 %v491
    %516 = vmatprep.subr.bf16.mxu0 0
    %517 = vmatpush1.bf16.msra.mxu0 %v493
    %518 = vmatprep.subr.bf16.mxu0 0
    %519 = vmatpush1.bf16.msra.mxu0 0
    %520 = vmatprep.subr.bf16.mxu0 0
    %521 = vmatpush1.bf16.msra.mxu0 0
    %522 = vmatprep.subr.bf16.mxu0 0
    %523 = vmatpush1.bf16.msra.mxu0 0
    %524 = vmatprep.subr.bf16.mxu0 0
    %525 = vmatpush1.bf16.msra.mxu0 0
    %526 = vmatprep.subr.bf16.mxu0 0
    %527 = vmatpush1.bf16.msra.mxu0 0
    %528 = vmatprep.subr.bf16.mxu0 0
    %529 = vmatpush1.bf16.msra.mxu0 0
    %530 = vmatprep.subr.bf16.mxu0 0
    %531 = vmatpush1.bf16.msra.mxu0 0
    %532 = vmatprep.subr.bf16.mxu0 0
    %533 = vmatpush1.bf16.msra.mxu0 0
    %534 = vmatprep.mubr.bf16.mxu0 0
    %535 = vmatmul.mubr.bf16.gmra.mrb[0].mxu0 %v476
    %v536 = vpop.f32.mrb[0].mxu0
    %v537 = vadd.f32 0.0, %v536
    %v538 = vpop.f32.mrb[0].mxu0
    %v539 = vpop.f32.mrb[0].mxu0
    %v540 = vadd.f32 0.0, %v539
    %v541 = vpop.f32.mrb[0].mxu0
    %542 = vdwg.mxu0
    %v543 = vadd.f32 %v467, %v537
    %v544 = vadd.f32 %v468, %v540
    %545 = vst.msk [vmem:[%s466] sm:$0xff] %vm374, %v543
    %546 = vst.msk [vmem:[%s466 + $0x8] sm:$0xff] %vm374, %v544
    // Predicated region
    $region34: #{tpu_custom_call.1} parent=1 // pred_check
      %p547 = pneg %p28
    $region35: #{tpu_custom_call.1} parent=1 // pred_check_branch
      %549 = sbr.rel (%p547) target = $region37
    $region36: #{tpu_custom_call.1} parent=1 // pred_region
      %v550 = vld [vmem:[#allocation2] sm:$0xff]
      %v551 = vld [vmem:[#allocation2 + $0x8] sm:$0xff]
      %v552 = vld [vmem:[%s377] sm:$0xff]
      %v553 = vld [vmem:[%s377 + $0x8] sm:$0xff]
      %v554 = vld [vmem:[%s466] sm:$0xff]
      %v555 = vld [vmem:[%s466 + $0x8] sm:$0xff]
      %558 = vrot.lane.b32.xlu0 %v552, 16
      %v559 = vpop.permute.xlu0 %558
      %560 = vrot.lane.b32.xlu0 %v553, 16
      %v561 = vpop.permute.xlu0 %560
      %566 = vrot.lane.b32.xlu0 %v554, 32
      %v567 = vpop.permute.xlu0 %566
      %568 = vrot.lane.b32.xlu0 %v555, 32
      %v569 = vpop.permute.xlu0 %568
      %v572 = vsel %vm374, %v550, %v559
      %v573 = vsel %vm374, %v551, %v561
      %vm574 = vcmask 261120
      %v575 = vsel %vm574, %v572, %v567
      %v576 = vsel %vm574, %v573, %v569
      %v577 = vld [vmem:[%s3] sm:$0xff]
      %v578 = vld [vmem:[%s3 + $0x8] sm:$0xff]
      %580 = vset.pattern.permute.xlu0 0
      %581 = vperm.xlu0 %580, %v577
      %v582 = vpop.permute.xlu0 %581
      %585 = vset.pattern.permute.xlu0 0
      %586 = vperm.xlu0 %585, %v578
      %v587 = vpop.permute.xlu0 %586
      %v589 = vmul.f32 %v575, %v582
      %v590 = vmul.f32 %v576, %v587
      %vm591 = vcmp.ge.f32.partialorder %v589, 0.0
      %vm592 = vcmp.ge.f32.partialorder %v590, 0.0
      %v593 = vmul.f32 %v589, 0.1
      %v594 = vmul.f32 %v590, 0.1
      %v595 = vsel %vm591, %v589, %v593
      %v596 = vsel %vm592, %v590, %v594
      %v597 = vpack.c.bf16 %v596, %v595
      %v598 = vld [vmem:[%s5] sm:$0xf]
      %v599 = vld [vmem:[%s5 + $0x4] sm:$0xf]
      %v600 = vld [vmem:[%s5 + $0x8] sm:$0xf]
      %v601 = vld [vmem:[%s5 + $0xc] sm:$0xf]
      %v602 = vld [vmem:[%s5 + $0x10] sm:$0xf]
      %v603 = vld [vmem:[%s5 + $0x14] sm:$0xf]
      %v604 = vld [vmem:[%s6] sm:$0x1]
      %v606 = vlaneseq
      %v607 = vshrl.u32 %v606, 7
      %v608 = vsub.s32 0, %v607
      %v609 = vrot.slane %v604, %v608
      %v617 = vunpack.c.l.b16 %v598
      %v618 = vunpack.c.l.b16 %v599
      %v619 = vunpack.c.l.b16 %v600
      %v620 = vunpack.c.l.b16 %v601
      %v621 = vunpack.c.l.b16 %v602
      %v622 = vunpack.c.l.b16 %v603
      %v623 = vpack.c.b16 %v618, %v617
      %v624 = vpack.c.b16 %v620, %v619
      %v625 = vpack.c.b16 %v622, %v621
      %vm629 = vcmask 392192
      %v631 = vsel %vm629, %v597, 0
      %633 = vmatprep.subr.bf16.mxu0 0
      %634 = vmatpush1.bf16.msra.mxu0 %v623
      %635 = vmatprep.subr.bf16.mxu0 0
      %636 = vmatpush1.bf16.msra.mxu0 %v624
      %637 = vmatprep.subr.bf16.mxu0 0
      %638 = vmatpush1.bf16.msra.mxu0 %v625
      %639 = vmatprep.subr.bf16.mxu0 0
      %640 = vmatpush1.bf16.msra.mxu0 0
      %641 = vmatprep.subr.bf16.mxu0 0
      %642 = vmatpush1.bf16.msra.mxu0 0
      %643 = vmatprep.subr.bf16.mxu0 0
      %644 = vmatpush1.bf16.msra.mxu0 0
      %645 = vmatprep.subr.bf16.mxu0 0
      %646 = vmatpush1.bf16.msra.mxu0 0
      %647 = vmatprep.subr.bf16.mxu0 0
      %648 = vmatpush1.bf16.msra.mxu0 0
      %649 = vmatprep.subr.bf16.mxu0 0
      %650 = vmatpush1.bf16.msra.mxu0 0
      %651 = vmatprep.subr.bf16.mxu0 0
      %652 = vmatpush1.bf16.msra.mxu0 0
      %653 = vmatprep.subr.bf16.mxu0 0
      %654 = vmatpush1.bf16.msra.mxu0 0
      %655 = vmatprep.subr.bf16.mxu0 0
      %656 = vmatpush1.bf16.msra.mxu0 0
      %657 = vmatprep.subr.bf16.mxu0 0
      %658 = vmatpush1.bf16.msra.mxu0 0
      %659 = vmatprep.subr.bf16.mxu0 0
      %660 = vmatpush1.bf16.msra.mxu0 0
      %661 = vmatprep.subr.bf16.mxu0 0
      %662 = vmatpush1.bf16.msra.mxu0 0
      %663 = vmatprep.subr.bf16.mxu0 0
      %664 = vmatpush1.bf16.msra.mxu0 0
      %665 = vmatprep.mubr.bf16.mxu0 0
      %666 = vmatmul.mubr.bf16.gmra.mrb[0].mxu0 %v631
      %v667 = vpop.f32.mrb[0].mxu0
      %v668 = vadd.f32 %v609, %v667
      %v669 = vpop.f32.mrb[0].mxu0
      %v670 = vpop.f32.mrb[0].mxu0
      %v671 = vadd.f32 %v609, %v670
      %v672 = vpop.f32.mrb[0].mxu0
      %673 = vdwg.mxu0
      %674 = vst [vmem:[#allocation3] sm:$0xff] %v668
      %675 = vst [vmem:[#allocation3 + $0x8] sm:$0xff] %v671
    $region37: #{tpu_custom_call.1} parent=1 // pred_fallthru
      _
    // Predicated region
    $region38: #{tpu_custom_call.1} parent=1 // pred_check
      _
    $region39: #{tpu_custom_call.1} parent=1 // pred_check_branch
      %677 = sbr.rel (0) target = $region41
    $region40: #{tpu_custom_call.1} parent=1 // pred_region
      %s679 = ssub.s32 256, 256
      %680 = vsyncadd [#allocation4], %s679
      %s681 = sshll.u32 [#allocation3], 4
      %s682 = int_to_ptr.vmem [resolvable:$true] %s681
      %687 = dma.vmem_to_hbm [thread:$0]  %s682, 256, %s7, [#allocation4], 128, 128, 8
    $region41: #{tpu_custom_call.1} parent=1 // pred_fallthru
      _
    // Predicated region
    $region42: #{tpu_custom_call.1} parent=1 // pred_check
      _
    $region43: #{tpu_custom_call.1} parent=1 // pred_check_branch
      %689 = sbr.rel (0) target = $region45
    $region44: #{tpu_custom_call.1} parent=1 // pred_region
      %690 = dma.done [#allocation4], 256
    $region45: #{tpu_custom_call.1} parent=1 // pred_fallthru
      _
    %691 = vsyncpa [#allocation4], 1

</llo_original>
